<compile_context>
chip_gen: v5e
topology: v5e:2x2
jax: 0.10.0
libtpu: 0.0.40
codegen_flags: <defaults>
</compile_context>

<pallas_src>
import jax
import jax.numpy as jnp
from jax.experimental import pallas as pl
from jax.experimental.pallas import tpu as pltpu

# ----------------------------- config (small) -----------------------------
B = 2          # batch
F = 64         # pooled resnet feature dim (image_feat)
H = 32         # feat_vec / LSTM hidden dim
E = 32         # word / style embedding dim
V = 32         # vocab size
T_CAP = 9      # caption length; decoder consumes cap[:, :-1] -> T steps
T = T_CAP - 1
N_STYLES = 2   # weight_feat_dict = {0: 0, 1: 1}


# -------------------- fused encoder + LSTM decoder + rand -------------------
def _fused_forward_kernel(seed_ref,                        # SMEM (1,) int32
                          tok_ref, sty_ref, img_ref,       # int ids + image feats
                          we_ref, se_ref,                  # embedding tables (bf16)
                          enc_w_ref, enc_b_ref,            # encoder params
                          wih_ref, whh_ref, bl_ref,        # LSTM params
                          wout_ref, bout_ref,              # output projection
                          logits_ref, rand_ref):           # outputs
    b = img_ref.shape[0]
    hdim = enc_w_ref.shape[1]
    tb = tok_ref.shape[0]
    t_steps = tb // b                                      # static python int
    vocab = we_ref.shape[0]
    nstyles = se_ref.shape[0]

    # ---- Resnet_feat_encoder: relu(image_feat @ W + b) -> feat_vec [B, H] ----
    feat = jnp.maximum(
        jnp.dot(img_ref[...], enc_w_ref[...], preferred_element_type=jnp.float32)
        + enc_b_ref[...], 0.0)

    # ---- fused embedding: x[t*B+b] = word_embed[tok] + style_embed[style[b]] ----
    # "two-hot" rows against the concatenated [V+NS, E] table -> one bf16 MXU matmul.
    tok = tok_ref[...]                                     # [T*B, 1] int32 (t-major)
    sty_t = jnp.tile(sty_ref[...], (t_steps, 1))           # [T*B, 1] int32
    lane = jax.lax.broadcasted_iota(jnp.int32, (tb, vocab + nstyles), 1)
    twohot = ((lane == tok) | (lane == (vocab + sty_t))).astype(jnp.bfloat16)
    table = jnp.concatenate([we_ref[...], se_ref[...]], axis=0)   # [V+NS, E] bf16
    x = jnp.dot(twohot, table, preferred_element_type=jnp.float32)  # [T*B, E] f32

    # ---- hoisted input-gate matmul for ALL timesteps: [T*B, 4H] ----
    xg = (jnp.dot(x.astype(jnp.bfloat16), wih_ref[...],
                  preferred_element_type=jnp.float32) + bl_ref[...])

    # ---- LSTM recurrence, statically unrolled; h/c stay in vregs ----
    whh = whh_ref[...]                                     # [H, 4H] bf16
    wout = wout_ref[...]                                   # [H, V]  bf16
    bout = bout_ref[...]                                   # [1, V]  f32
    h = feat
    c = jnp.zeros_like(feat)
    logit_blocks = []
    for t in range(t_steps):
        gates = xg[t * b:(t + 1) * b, :] + jnp.dot(
            h.astype(jnp.bfloat16), whh, preferred_element_type=jnp.float32)  # [B,4H]
        sg = jax.nn.sigmoid(gates)                         # whole-vreg activations,
        tg = jnp.tanh(gates)                               # then static gate slices
        i_g = sg[:, 0 * hdim:1 * hdim]
        f_g = sg[:, 1 * hdim:2 * hdim]
        g_g = tg[:, 2 * hdim:3 * hdim]
        o_g = sg[:, 3 * hdim:4 * hdim]
        c = f_g * c + i_g * g_g
        h = o_g * jnp.tanh(c)
        # per-step projection is off the serial chain; collected in-register
        logit_blocks.append(
            jnp.dot(h.astype(jnp.bfloat16), wout,
                    preferred_element_type=jnp.float32) + bout)   # [B, V]

    # ---- single lane-dense store: [B, T*V] (T*V = 256, multiple of 128) ----
    logits_ref[...] = jnp.concatenate(logit_blocks, axis=1).astype(logits_ref.dtype)

    # ---- torch.rand(feat_vec.shape) x3 as ONE [B, 3H] buffer (int-hash uniforms) ----
    seed = seed_ref[0]
    rdim = rand_ref.shape[1]
    ri = jax.lax.broadcasted_iota(jnp.int32, (b, rdim), 0)
    ci = jax.lax.broadcasted_iota(jnp.int32, (b, rdim), 1)
    xh = ri * jnp.int32(rdim) + ci + seed * jnp.int32(16843009) + jnp.int32(1)
    xh = ((xh >> 16) ^ xh) * jnp.int32(0x045D9F3B)
    xh = ((xh >> 16) ^ xh) * jnp.int32(0x045D9F3B)
    xh = (xh >> 16) ^ xh
    rand_ref[...] = ((xh & jnp.int32(0x00FFFFFF)).astype(jnp.float32)
                     * jnp.float32(1.0 / 16777216.0))


def fused_forward(image_feat, tokens_tm, style_col, params, rand_seed):
    """One pallas_call: embeddings -> encoder -> unrolled LSTM -> projection -> uniforms."""
    bsz = image_feat.shape[0]
    tb = tokens_tm.shape[0]
    t_steps = tb // bsz
    hid = params["enc_w"].shape[1]
    vocab = params["w_out"].shape[1]
    seed_arr = jnp.asarray([rand_seed], dtype=jnp.int32)

    vmem = pl.BlockSpec(memory_space=pltpu.MemorySpace.VMEM)
    smem = pl.BlockSpec(memory_space=pltpu.MemorySpace.SMEM)

    return pl.pallas_call(
        _fused_forward_kernel,
        out_shape=(
            jax.ShapeDtypeStruct((bsz, t_steps * vocab), jnp.float32),  # logits [B, T*V]
            jax.ShapeDtypeStruct((bsz, 3 * hid), jnp.float32),          # r1|r2|r3 [B, 3H]
        ),
        in_specs=[smem] + [vmem] * 12,
        out_specs=(vmem, vmem),
    )(seed_arr, tokens_tm, style_col, image_feat.astype(jnp.bfloat16),
      params["word_embed"], params["style_embed"],
      params["enc_w"], params["enc_b"],
      params["w_ih"], params["w_hh"], params["b_lstm"],
      params["w_out"], params["b_out"])


# ------------------------------- parameters --------------------------------
def init_params(key):
    ks = jax.random.split(key, 8)
    s = 0.02
    bf = jnp.bfloat16

    def nrm(k, shape):
        return (s * jax.random.normal(k, shape, jnp.float32)).astype(bf)

    return {
        # bf16 matmul weights (MXU-native on v6e/v7x, accepted on v5e); f32 biases.
        "enc_w": nrm(ks[0], (F, H)),
        "enc_b": jnp.zeros((1, H), jnp.float32),
        "word_embed": nrm(ks[1], (V, E)),
        "style_embed": nrm(ks[2], (N_STYLES, E)),
        "w_ih": nrm(ks[3], (E, 4 * H)),
        "w_hh": nrm(ks[4], (H, 4 * H)),
        # NOTE: PyTorch LSTM has b_ih + b_hh; porting trained weights requires summing them.
        "b_lstm": jnp.zeros((1, 4 * H), jnp.float32),
        "w_out": nrm(ks[5], (H, V)),
        "b_out": jnp.zeros((1, V), jnp.float32),
    }


# ------------------------------- forward -----------------------------------
def encdec_forward(params, cap, cap_len, obj, obj_num, image_feat, style_label,
                   rand_seed=0):
    # integer-only wrapper glue (tiny); all float embedding work happens in-kernel
    tokens = cap[:, :-1]                                           # [B, T]
    bsz, t_steps = tokens.shape
    tokens_tm = tokens.T.reshape(t_steps * bsz, 1).astype(jnp.int32)   # t-major rows
    style_col = style_label.reshape(bsz, 1).astype(jnp.int32)

    logits_bt, rand = fused_forward(image_feat, tokens_tm, style_col, params, rand_seed)

    vocab = params["w_out"].shape[1]
    hid = params["enc_w"].shape[1]
    logit = logits_bt.reshape(bsz, t_steps, vocab)                 # [B, T, V], no transpose
    r1 = rand[:, 0 * hid:1 * hid]
    r2 = rand[:, 1 * hid:2 * hid]
    r3 = rand[:, 2 * hid:3 * hid]
    return logit, r1, r2, r3


# --------------------------------- main -------------------------------------
if __name__ == "__main__":
    key = jax.random.PRNGKey(0)
    kp, k1, k2, k3 = jax.random.split(key, 4)
    params = init_params(kp)

    cap = jax.random.randint(k1, (B, T_CAP), 0, V, dtype=jnp.int32)
    cap_len = jnp.full((B,), T_CAP, dtype=jnp.int32)
    obj = jax.random.randint(k2, (B, 4), 0, V, dtype=jnp.int32)   # unused in forward
    obj_num = jnp.full((B,), 4, dtype=jnp.int32)                  # unused in forward
    image_feat = jax.random.normal(k3, (B, F), dtype=jnp.float32)
    style_label = jnp.array([0, 1], dtype=jnp.int32)

    fwd = jax.jit(encdec_forward)
    logit, r1, r2, r3 = fwd(params, cap, cap_len, obj, obj_num,
                            image_feat, style_label)
    jax.block_until_ready((logit, r1, r2, r3))

    assert logit.shape == (B, T, V), logit.shape
    assert r1.shape == (B, H) and r2.shape == (B, H) and r3.shape == (B, H)
    assert bool(jnp.all(jnp.isfinite(logit)))
    for r in (r1, r2, r3):
        assert bool(jnp.all((r >= 0.0) & (r < 1.0)))
    print("KERNEL_OK")
</pallas_src>

<mosaic_0001>
module attributes {stable_mosaic.version = 11 : i64} {
  func.func @_fused_forward_kernel(%arg0: memref<1xi32, #tpu.memory_space<smem>>, %arg1: memref<16x1xi32, #tpu.memory_space<vmem>>, %arg2: memref<2x1xi32, #tpu.memory_space<vmem>>, %arg3: memref<2x64xbf16, #tpu.memory_space<vmem>>, %arg4: memref<32x32xbf16, #tpu.memory_space<vmem>>, %arg5: memref<2x32xbf16, #tpu.memory_space<vmem>>, %arg6: memref<64x32xbf16, #tpu.memory_space<vmem>>, %arg7: memref<1x32xf32, #tpu.memory_space<vmem>>, %arg8: memref<32x128xbf16, #tpu.memory_space<vmem>>, %arg9: memref<32x128xbf16, #tpu.memory_space<vmem>>, %arg10: memref<1x128xf32, #tpu.memory_space<vmem>>, %arg11: memref<32x32xbf16, #tpu.memory_space<vmem>>, %arg12: memref<1x32xf32, #tpu.memory_space<vmem>>, %arg13: memref<2x256xf32, #tpu.memory_space<vmem>>, %arg14: memref<2x96xf32, #tpu.memory_space<vmem>>) attributes {dimension_semantics = [], scalar_prefetch = 0 : i64, scratch_operands = 0 : i64, tpu.core_type = #tpu.core_type<tc>} {
    %c0 = arith.constant 0 : index
    %c0_0 = arith.constant 0 : index
    %0 = vector.load %arg3[%c0, %c0_0] : memref<2x64xbf16, #tpu.memory_space<vmem>>, vector<2x64xbf16>
    %c0_1 = arith.constant 0 : index
    %c0_2 = arith.constant 0 : index
    %1 = vector.load %arg6[%c0_1, %c0_2] : memref<64x32xbf16, #tpu.memory_space<vmem>>, vector<64x32xbf16>
    %cst = arith.constant dense<0.000000e+00> : vector<2x32xf32>
    %2 = tpu.matmul %0, %1, %cst {dimension_numbers = #tpu.dot_dimension_numbers<[1], [0], [0], [1], [0, 0, 1, 1], [], []>} : vector<2x64xbf16>, vector<64x32xbf16>, vector<2x32xf32> -> vector<2x32xf32>
    %c0_3 = arith.constant 0 : index
    %c0_4 = arith.constant 0 : index
    %3 = vector.load %arg7[%c0_3, %c0_4] : memref<1x32xf32, #tpu.memory_space<vmem>>, vector<1x32xf32>
    %4 = vector.broadcast %3 : vector<1x32xf32> to vector<2x32xf32>
    %5 = arith.addf %2, %4 : vector<2x32xf32>
    %cst_5 = arith.constant 0.000000e+00 : f32
    %6 = vector.broadcast %cst_5 : f32 to vector<2x32xf32>
    %7 = arith.maximumf %5, %6 : vector<2x32xf32>
    %c0_6 = arith.constant 0 : index
    %c0_7 = arith.constant 0 : index
    %8 = vector.load %arg1[%c0_6, %c0_7] : memref<16x1xi32, #tpu.memory_space<vmem>>, vector<16x1xi32>
    %c0_8 = arith.constant 0 : index
    %c0_9 = arith.constant 0 : index
    %9 = vector.load %arg2[%c0_8, %c0_9] : memref<2x1xi32, #tpu.memory_space<vmem>>, vector<2x1xi32>
    %10 = tpu.concatenate %9, %9, %9, %9, %9, %9, %9, %9 in 0 : vector<2x1xi32>, vector<2x1xi32>, vector<2x1xi32>, vector<2x1xi32>, vector<2x1xi32>, vector<2x1xi32>, vector<2x1xi32>, vector<2x1xi32> -> vector<16x1xi32>
    %11 = tpu.iota {dimensions = array<i32: 1>} : vector<16x34xi32>
    %12 = vector.broadcast %8 : vector<16x1xi32> to vector<16x34xi32>
    %13 = arith.cmpi eq, %11, %12 : vector<16x34xi32>
    %c32_i32 = arith.constant 32 : i32
    %14 = vector.broadcast %c32_i32 : i32 to vector<16x1xi32>
    %15 = arith.addi %14, %10 : vector<16x1xi32>
    %16 = vector.broadcast %15 : vector<16x1xi32> to vector<16x34xi32>
    %17 = arith.cmpi eq, %11, %16 : vector<16x34xi32>
    %18 = arith.ori %13, %17 : vector<16x34xi1>
    %19 = arith.extui %18 : vector<16x34xi1> to vector<16x34xi32>
    %20 = arith.sitofp %19 : vector<16x34xi32> to vector<16x34xf32>
    %21 = arith.truncf %20 : vector<16x34xf32> to vector<16x34xbf16>
    %c0_10 = arith.constant 0 : index
    %c0_11 = arith.constant 0 : index
    %22 = vector.load %arg4[%c0_10, %c0_11] : memref<32x32xbf16, #tpu.memory_space<vmem>>, vector<32x32xbf16>
    %c0_12 = arith.constant 0 : index
    %c0_13 = arith.constant 0 : index
    %23 = vector.load %arg5[%c0_12, %c0_13] : memref<2x32xbf16, #tpu.memory_space<vmem>>, vector<2x32xbf16>
    %24 = tpu.concatenate %22, %23 in 0 : vector<32x32xbf16>, vector<2x32xbf16> -> vector<34x32xbf16>
    %cst_14 = arith.constant dense<0.000000e+00> : vector<16x32xf32>
    %25 = tpu.matmul %21, %24, %cst_14 {dimension_numbers = #tpu.dot_dimension_numbers<[1], [0], [0], [1], [0, 0, 1, 1], [], []>} : vector<16x34xbf16>, vector<34x32xbf16>, vector<16x32xf32> -> vector<16x32xf32>
    %26 = arith.truncf %25 : vector<16x32xf32> to vector<16x32xbf16>
    %c0_15 = arith.constant 0 : index
    %c0_16 = arith.constant 0 : index
    %27 = vector.load %arg8[%c0_15, %c0_16] : memref<32x128xbf16, #tpu.memory_space<vmem>>, vector<32x128xbf16>
    %cst_17 = arith.constant dense<0.000000e+00> : vector<16x128xf32>
    %28 = tpu.matmul %26, %27, %cst_17 {dimension_numbers = #tpu.dot_dimension_numbers<[1], [0], [0], [1], [0, 0, 1, 1], [], []>} : vector<16x32xbf16>, vector<32x128xbf16>, vector<16x128xf32> -> vector<16x128xf32>
    %c0_18 = arith.constant 0 : index
    %c0_19 = arith.constant 0 : index
    %29 = vector.load %arg10[%c0_18, %c0_19] : memref<1x128xf32, #tpu.memory_space<vmem>>, vector<1x128xf32>
    %30 = vector.broadcast %29 : vector<1x128xf32> to vector<16x128xf32>
    %31 = arith.addf %28, %30 : vector<16x128xf32>
    %c0_20 = arith.constant 0 : index
    %c0_21 = arith.constant 0 : index
    %32 = vector.load %arg9[%c0_20, %c0_21] : memref<32x128xbf16, #tpu.memory_space<vmem>>, vector<32x128xbf16>
    %c0_22 = arith.constant 0 : index
    %c0_23 = arith.constant 0 : index
    %33 = vector.load %arg11[%c0_22, %c0_23] : memref<32x32xbf16, #tpu.memory_space<vmem>>, vector<32x32xbf16>
    %c0_24 = arith.constant 0 : index
    %c0_25 = arith.constant 0 : index
    %34 = vector.load %arg12[%c0_24, %c0_25] : memref<1x32xf32, #tpu.memory_space<vmem>>, vector<1x32xf32>
    %cst_26 = arith.constant 0.000000e+00 : f32
    %35 = vector.broadcast %cst_26 : f32 to vector<2x32xf32>
    %36 = vector.extract_strided_slice %31 {offsets = [0, 0], sizes = [2, 128], strides = [1, 1]} : vector<16x128xf32> to vector<2x128xf32>
    %37 = arith.truncf %7 : vector<2x32xf32> to vector<2x32xbf16>
    %cst_27 = arith.constant dense<0.000000e+00> : vector<2x128xf32>
    %38 = tpu.matmul %37, %32, %cst_27 {dimension_numbers = #tpu.dot_dimension_numbers<[1], [0], [0], [1], [0, 0, 1, 1], [], []>} : vector<2x32xbf16>, vector<32x128xbf16>, vector<2x128xf32> -> vector<2x128xf32>
    %39 = arith.addf %36, %38 : vector<2x128xf32>
    %40 = arith.negf %39 : vector<2x128xf32>
    %41 = math.exp %40 : vector<2x128xf32>
    %cst_28 = arith.constant 1.000000e+00 : f32
    %42 = vector.broadcast %cst_28 : f32 to vector<2x128xf32>
    %43 = arith.addf %42, %41 : vector<2x128xf32>
    %44 = arith.divf %42, %43 : vector<2x128xf32>
    %45 = math.tanh %39 : vector<2x128xf32>
    %46 = vector.extract_strided_slice %44 {offsets = [0, 0], sizes = [2, 32], strides = [1, 1]} : vector<2x128xf32> to vector<2x32xf32>
    %47 = vector.extract_strided_slice %44 {offsets = [0, 32], sizes = [2, 32], strides = [1, 1]} : vector<2x128xf32> to vector<2x32xf32>
    %48 = vector.extract_strided_slice %45 {offsets = [0, 64], sizes = [2, 32], strides = [1, 1]} : vector<2x128xf32> to vector<2x32xf32>
    %49 = vector.extract_strided_slice %44 {offsets = [0, 96], sizes = [2, 32], strides = [1, 1]} : vector<2x128xf32> to vector<2x32xf32>
    %50 = arith.mulf %47, %35 : vector<2x32xf32>
    %51 = arith.mulf %46, %48 : vector<2x32xf32>
    %52 = arith.addf %50, %51 : vector<2x32xf32>
    %53 = math.tanh %52 : vector<2x32xf32>
    %54 = arith.mulf %49, %53 : vector<2x32xf32>
    %55 = arith.truncf %54 : vector<2x32xf32> to vector<2x32xbf16>
    %cst_29 = arith.constant dense<0.000000e+00> : vector<2x32xf32>
    %56 = tpu.matmul %55, %33, %cst_29 {dimension_numbers = #tpu.dot_dimension_numbers<[1], [0], [0], [1], [0, 0, 1, 1], [], []>} : vector<2x32xbf16>, vector<32x32xbf16>, vector<2x32xf32> -> vector<2x32xf32>
    %57 = vector.broadcast %34 : vector<1x32xf32> to vector<2x32xf32>
    %58 = arith.addf %56, %57 : vector<2x32xf32>
    %59 = vector.extract_strided_slice %31 {offsets = [2, 0], sizes = [2, 128], strides = [1, 1]} : vector<16x128xf32> to vector<2x128xf32>
    %60 = arith.truncf %54 : vector<2x32xf32> to vector<2x32xbf16>
    %cst_30 = arith.constant dense<0.000000e+00> : vector<2x128xf32>
    %61 = tpu.matmul %60, %32, %cst_30 {dimension_numbers = #tpu.dot_dimension_numbers<[1], [0], [0], [1], [0, 0, 1, 1], [], []>} : vector<2x32xbf16>, vector<32x128xbf16>, vector<2x128xf32> -> vector<2x128xf32>
    %62 = arith.addf %59, %61 : vector<2x128xf32>
    %63 = arith.negf %62 : vector<2x128xf32>
    %64 = math.exp %63 : vector<2x128xf32>
    %cst_31 = arith.constant 1.000000e+00 : f32
    %65 = vector.broadcast %cst_31 : f32 to vector<2x128xf32>
    %66 = arith.addf %65, %64 : vector<2x128xf32>
    %67 = arith.divf %65, %66 : vector<2x128xf32>
    %68 = math.tanh %62 : vector<2x128xf32>
    %69 = vector.extract_strided_slice %67 {offsets = [0, 0], sizes = [2, 32], strides = [1, 1]} : vector<2x128xf32> to vector<2x32xf32>
    %70 = vector.extract_strided_slice %67 {offsets = [0, 32], sizes = [2, 32], strides = [1, 1]} : vector<2x128xf32> to vector<2x32xf32>
    %71 = vector.extract_strided_slice %68 {offsets = [0, 64], sizes = [2, 32], strides = [1, 1]} : vector<2x128xf32> to vector<2x32xf32>
    %72 = vector.extract_strided_slice %67 {offsets = [0, 96], sizes = [2, 32], strides = [1, 1]} : vector<2x128xf32> to vector<2x32xf32>
    %73 = arith.mulf %70, %52 : vector<2x32xf32>
    %74 = arith.mulf %69, %71 : vector<2x32xf32>
    %75 = arith.addf %73, %74 : vector<2x32xf32>
    %76 = math.tanh %75 : vector<2x32xf32>
    %77 = arith.mulf %72, %76 : vector<2x32xf32>
    %78 = arith.truncf %77 : vector<2x32xf32> to vector<2x32xbf16>
    %cst_32 = arith.constant dense<0.000000e+00> : vector<2x32xf32>
    %79 = tpu.matmul %78, %33, %cst_32 {dimension_numbers = #tpu.dot_dimension_numbers<[1], [0], [0], [1], [0, 0, 1, 1], [], []>} : vector<2x32xbf16>, vector<32x32xbf16>, vector<2x32xf32> -> vector<2x32xf32>
    %80 = vector.broadcast %34 : vector<1x32xf32> to vector<2x32xf32>
    %81 = arith.addf %79, %80 : vector<2x32xf32>
    %82 = vector.extract_strided_slice %31 {offsets = [4, 0], sizes = [2, 128], strides = [1, 1]} : vector<16x128xf32> to vector<2x128xf32>
    %83 = arith.truncf %77 : vector<2x32xf32> to vector<2x32xbf16>
    %cst_33 = arith.constant dense<0.000000e+00> : vector<2x128xf32>
    %84 = tpu.matmul %83, %32, %cst_33 {dimension_numbers = #tpu.dot_dimension_numbers<[1], [0], [0], [1], [0, 0, 1, 1], [], []>} : vector<2x32xbf16>, vector<32x128xbf16>, vector<2x128xf32> -> vector<2x128xf32>
    %85 = arith.addf %82, %84 : vector<2x128xf32>
    %86 = arith.negf %85 : vector<2x128xf32>
    %87 = math.exp %86 : vector<2x128xf32>
    %cst_34 = arith.constant 1.000000e+00 : f32
    %88 = vector.broadcast %cst_34 : f32 to vector<2x128xf32>
    %89 = arith.addf %88, %87 : vector<2x128xf32>
    %90 = arith.divf %88, %89 : vector<2x128xf32>
    %91 = math.tanh %85 : vector<2x128xf32>
    %92 = vector.extract_strided_slice %90 {offsets = [0, 0], sizes = [2, 32], strides = [1, 1]} : vector<2x128xf32> to vector<2x32xf32>
    %93 = vector.extract_strided_slice %90 {offsets = [0, 32], sizes = [2, 32], strides = [1, 1]} : vector<2x128xf32> to vector<2x32xf32>
    %94 = vector.extract_strided_slice %91 {offsets = [0, 64], sizes = [2, 32], strides = [1, 1]} : vector<2x128xf32> to vector<2x32xf32>
    %95 = vector.extract_strided_slice %90 {offsets = [0, 96], sizes = [2, 32], strides = [1, 1]} : vector<2x128xf32> to vector<2x32xf32>
    %96 = arith.mulf %93, %75 : vector<2x32xf32>
    %97 = arith.mulf %92, %94 : vector<2x32xf32>
    %98 = arith.addf %96, %97 : vector<2x32xf32>
    %99 = math.tanh %98 : vector<2x32xf32>
    %100 = arith.mulf %95, %99 : vector<2x32xf32>
    %101 = arith.truncf %100 : vector<2x32xf32> to vector<2x32xbf16>
    %cst_35 = arith.constant dense<0.000000e+00> : vector<2x32xf32>
    %102 = tpu.matmul %101, %33, %cst_35 {dimension_numbers = #tpu.dot_dimension_numbers<[1], [0], [0], [1], [0, 0, 1, 1], [], []>} : vector<2x32xbf16>, vector<32x32xbf16>, vector<2x32xf32> -> vector<2x32xf32>
    %103 = vector.broadcast %34 : vector<1x32xf32> to vector<2x32xf32>
    %104 = arith.addf %102, %103 : vector<2x32xf32>
    %105 = vector.extract_strided_slice %31 {offsets = [6, 0], sizes = [2, 128], strides = [1, 1]} : vector<16x128xf32> to vector<2x128xf32>
    %106 = arith.truncf %100 : vector<2x32xf32> to vector<2x32xbf16>
    %cst_36 = arith.constant dense<0.000000e+00> : vector<2x128xf32>
    %107 = tpu.matmul %106, %32, %cst_36 {dimension_numbers = #tpu.dot_dimension_numbers<[1], [0], [0], [1], [0, 0, 1, 1], [], []>} : vector<2x32xbf16>, vector<32x128xbf16>, vector<2x128xf32> -> vector<2x128xf32>
    %108 = arith.addf %105, %107 : vector<2x128xf32>
    %109 = arith.negf %108 : vector<2x128xf32>
    %110 = math.exp %109 : vector<2x128xf32>
    %cst_37 = arith.constant 1.000000e+00 : f32
    %111 = vector.broadcast %cst_37 : f32 to vector<2x128xf32>
    %112 = arith.addf %111, %110 : vector<2x128xf32>
    %113 = arith.divf %111, %112 : vector<2x128xf32>
    %114 = math.tanh %108 : vector<2x128xf32>
    %115 = vector.extract_strided_slice %113 {offsets = [0, 0], sizes = [2, 32], strides = [1, 1]} : vector<2x128xf32> to vector<2x32xf32>
    %116 = vector.extract_strided_slice %113 {offsets = [0, 32], sizes = [2, 32], strides = [1, 1]} : vector<2x128xf32> to vector<2x32xf32>
    %117 = vector.extract_strided_slice %114 {offsets = [0, 64], sizes = [2, 32], strides = [1, 1]} : vector<2x128xf32> to vector<2x32xf32>
    %118 = vector.extract_strided_slice %113 {offsets = [0, 96], sizes = [2, 32], strides = [1, 1]} : vector<2x128xf32> to vector<2x32xf32>
    %119 = arith.mulf %116, %98 : vector<2x32xf32>
    %120 = arith.mulf %115, %117 : vector<2x32xf32>
    %121 = arith.addf %119, %120 : vector<2x32xf32>
    %122 = math.tanh %121 : vector<2x32xf32>
    %123 = arith.mulf %118, %122 : vector<2x32xf32>
    %124 = arith.truncf %123 : vector<2x32xf32> to vector<2x32xbf16>
    %cst_38 = arith.constant dense<0.000000e+00> : vector<2x32xf32>
    %125 = tpu.matmul %124, %33, %cst_38 {dimension_numbers = #tpu.dot_dimension_numbers<[1], [0], [0], [1], [0, 0, 1, 1], [], []>} : vector<2x32xbf16>, vector<32x32xbf16>, vector<2x32xf32> -> vector<2x32xf32>
    %126 = vector.broadcast %34 : vector<1x32xf32> to vector<2x32xf32>
    %127 = arith.addf %125, %126 : vector<2x32xf32>
    %128 = vector.extract_strided_slice %31 {offsets = [8, 0], sizes = [2, 128], strides = [1, 1]} : vector<16x128xf32> to vector<2x128xf32>
    %129 = arith.truncf %123 : vector<2x32xf32> to vector<2x32xbf16>
    %cst_39 = arith.constant dense<0.000000e+00> : vector<2x128xf32>
    %130 = tpu.matmul %129, %32, %cst_39 {dimension_numbers = #tpu.dot_dimension_numbers<[1], [0], [0], [1], [0, 0, 1, 1], [], []>} : vector<2x32xbf16>, vector<32x128xbf16>, vector<2x128xf32> -> vector<2x128xf32>
    %131 = arith.addf %128, %130 : vector<2x128xf32>
    %132 = arith.negf %131 : vector<2x128xf32>
    %133 = math.exp %132 : vector<2x128xf32>
    %cst_40 = arith.constant 1.000000e+00 : f32
    %134 = vector.broadcast %cst_40 : f32 to vector<2x128xf32>
    %135 = arith.addf %134, %133 : vector<2x128xf32>
    %136 = arith.divf %134, %135 : vector<2x128xf32>
    %137 = math.tanh %131 : vector<2x128xf32>
    %138 = vector.extract_strided_slice %136 {offsets = [0, 0], sizes = [2, 32], strides = [1, 1]} : vector<2x128xf32> to vector<2x32xf32>
    %139 = vector.extract_strided_slice %136 {offsets = [0, 32], sizes = [2, 32], strides = [1, 1]} : vector<2x128xf32> to vector<2x32xf32>
    %140 = vector.extract_strided_slice %137 {offsets = [0, 64], sizes = [2, 32], strides = [1, 1]} : vector<2x128xf32> to vector<2x32xf32>
    %141 = vector.extract_strided_slice %136 {offsets = [0, 96], sizes = [2, 32], strides = [1, 1]} : vector<2x128xf32> to vector<2x32xf32>
    %142 = arith.mulf %139, %121 : vector<2x32xf32>
    %143 = arith.mulf %138, %140 : vector<2x32xf32>
    %144 = arith.addf %142, %143 : vector<2x32xf32>
    %145 = math.tanh %144 : vector<2x32xf32>
    %146 = arith.mulf %141, %145 : vector<2x32xf32>
    %147 = arith.truncf %146 : vector<2x32xf32> to vector<2x32xbf16>
    %cst_41 = arith.constant dense<0.000000e+00> : vector<2x32xf32>
    %148 = tpu.matmul %147, %33, %cst_41 {dimension_numbers = #tpu.dot_dimension_numbers<[1], [0], [0], [1], [0, 0, 1, 1], [], []>} : vector<2x32xbf16>, vector<32x32xbf16>, vector<2x32xf32> -> vector<2x32xf32>
    %149 = vector.broadcast %34 : vector<1x32xf32> to vector<2x32xf32>
    %150 = arith.addf %148, %149 : vector<2x32xf32>
    %151 = vector.extract_strided_slice %31 {offsets = [10, 0], sizes = [2, 128], strides = [1, 1]} : vector<16x128xf32> to vector<2x128xf32>
    %152 = arith.truncf %146 : vector<2x32xf32> to vector<2x32xbf16>
    %cst_42 = arith.constant dense<0.000000e+00> : vector<2x128xf32>
    %153 = tpu.matmul %152, %32, %cst_42 {dimension_numbers = #tpu.dot_dimension_numbers<[1], [0], [0], [1], [0, 0, 1, 1], [], []>} : vector<2x32xbf16>, vector<32x128xbf16>, vector<2x128xf32> -> vector<2x128xf32>
    %154 = arith.addf %151, %153 : vector<2x128xf32>
    %155 = arith.negf %154 : vector<2x128xf32>
    %156 = math.exp %155 : vector<2x128xf32>
    %cst_43 = arith.constant 1.000000e+00 : f32
    %157 = vector.broadcast %cst_43 : f32 to vector<2x128xf32>
    %158 = arith.addf %157, %156 : vector<2x128xf32>
    %159 = arith.divf %157, %158 : vector<2x128xf32>
    %160 = math.tanh %154 : vector<2x128xf32>
    %161 = vector.extract_strided_slice %159 {offsets = [0, 0], sizes = [2, 32], strides = [1, 1]} : vector<2x128xf32> to vector<2x32xf32>
    %162 = vector.extract_strided_slice %159 {offsets = [0, 32], sizes = [2, 32], strides = [1, 1]} : vector<2x128xf32> to vector<2x32xf32>
    %163 = vector.extract_strided_slice %160 {offsets = [0, 64], sizes = [2, 32], strides = [1, 1]} : vector<2x128xf32> to vector<2x32xf32>
    %164 = vector.extract_strided_slice %159 {offsets = [0, 96], sizes = [2, 32], strides = [1, 1]} : vector<2x128xf32> to vector<2x32xf32>
    %165 = arith.mulf %162, %144 : vector<2x32xf32>
    %166 = arith.mulf %161, %163 : vector<2x32xf32>
    %167 = arith.addf %165, %166 : vector<2x32xf32>
    %168 = math.tanh %167 : vector<2x32xf32>
    %169 = arith.mulf %164, %168 : vector<2x32xf32>
    %170 = arith.truncf %169 : vector<2x32xf32> to vector<2x32xbf16>
    %cst_44 = arith.constant dense<0.000000e+00> : vector<2x32xf32>
    %171 = tpu.matmul %170, %33, %cst_44 {dimension_numbers = #tpu.dot_dimension_numbers<[1], [0], [0], [1], [0, 0, 1, 1], [], []>} : vector<2x32xbf16>, vector<32x32xbf16>, vector<2x32xf32> -> vector<2x32xf32>
    %172 = vector.broadcast %34 : vector<1x32xf32> to vector<2x32xf32>
    %173 = arith.addf %171, %172 : vector<2x32xf32>
    %174 = vector.extract_strided_slice %31 {offsets = [12, 0], sizes = [2, 128], strides = [1, 1]} : vector<16x128xf32> to vector<2x128xf32>
    %175 = arith.truncf %169 : vector<2x32xf32> to vector<2x32xbf16>
    %cst_45 = arith.constant dense<0.000000e+00> : vector<2x128xf32>
    %176 = tpu.matmul %175, %32, %cst_45 {dimension_numbers = #tpu.dot_dimension_numbers<[1], [0], [0], [1], [0, 0, 1, 1], [], []>} : vector<2x32xbf16>, vector<32x128xbf16>, vector<2x128xf32> -> vector<2x128xf32>
    %177 = arith.addf %174, %176 : vector<2x128xf32>
    %178 = arith.negf %177 : vector<2x128xf32>
    %179 = math.exp %178 : vector<2x128xf32>
    %cst_46 = arith.constant 1.000000e+00 : f32
    %180 = vector.broadcast %cst_46 : f32 to vector<2x128xf32>
    %181 = arith.addf %180, %179 : vector<2x128xf32>
    %182 = arith.divf %180, %181 : vector<2x128xf32>
    %183 = math.tanh %177 : vector<2x128xf32>
    %184 = vector.extract_strided_slice %182 {offsets = [0, 0], sizes = [2, 32], strides = [1, 1]} : vector<2x128xf32> to vector<2x32xf32>
    %185 = vector.extract_strided_slice %182 {offsets = [0, 32], sizes = [2, 32], strides = [1, 1]} : vector<2x128xf32> to vector<2x32xf32>
    %186 = vector.extract_strided_slice %183 {offsets = [0, 64], sizes = [2, 32], strides = [1, 1]} : vector<2x128xf32> to vector<2x32xf32>
    %187 = vector.extract_strided_slice %182 {offsets = [0, 96], sizes = [2, 32], strides = [1, 1]} : vector<2x128xf32> to vector<2x32xf32>
    %188 = arith.mulf %185, %167 : vector<2x32xf32>
    %189 = arith.mulf %184, %186 : vector<2x32xf32>
    %190 = arith.addf %188, %189 : vector<2x32xf32>
    %191 = math.tanh %190 : vector<2x32xf32>
    %192 = arith.mulf %187, %191 : vector<2x32xf32>
    %193 = arith.truncf %192 : vector<2x32xf32> to vector<2x32xbf16>
    %cst_47 = arith.constant dense<0.000000e+00> : vector<2x32xf32>
    %194 = tpu.matmul %193, %33, %cst_47 {dimension_numbers = #tpu.dot_dimension_numbers<[1], [0], [0], [1], [0, 0, 1, 1], [], []>} : vector<2x32xbf16>, vector<32x32xbf16>, vector<2x32xf32> -> vector<2x32xf32>
    %195 = vector.broadcast %34 : vector<1x32xf32> to vector<2x32xf32>
    %196 = arith.addf %194, %195 : vector<2x32xf32>
    %197 = vector.extract_strided_slice %31 {offsets = [14, 0], sizes = [2, 128], strides = [1, 1]} : vector<16x128xf32> to vector<2x128xf32>
    %198 = arith.truncf %192 : vector<2x32xf32> to vector<2x32xbf16>
    %cst_48 = arith.constant dense<0.000000e+00> : vector<2x128xf32>
    %199 = tpu.matmul %198, %32, %cst_48 {dimension_numbers = #tpu.dot_dimension_numbers<[1], [0], [0], [1], [0, 0, 1, 1], [], []>} : vector<2x32xbf16>, vector<32x128xbf16>, vector<2x128xf32> -> vector<2x128xf32>
    %200 = arith.addf %197, %199 : vector<2x128xf32>
    %201 = arith.negf %200 : vector<2x128xf32>
    %202 = math.exp %201 : vector<2x128xf32>
    %cst_49 = arith.constant 1.000000e+00 : f32
    %203 = vector.broadcast %cst_49 : f32 to vector<2x128xf32>
    %204 = arith.addf %203, %202 : vector<2x128xf32>
    %205 = arith.divf %203, %204 : vector<2x128xf32>
    %206 = math.tanh %200 : vector<2x128xf32>
    %207 = vector.extract_strided_slice %205 {offsets = [0, 0], sizes = [2, 32], strides = [1, 1]} : vector<2x128xf32> to vector<2x32xf32>
    %208 = vector.extract_strided_slice %205 {offsets = [0, 32], sizes = [2, 32], strides = [1, 1]} : vector<2x128xf32> to vector<2x32xf32>
    %209 = vector.extract_strided_slice %206 {offsets = [0, 64], sizes = [2, 32], strides = [1, 1]} : vector<2x128xf32> to vector<2x32xf32>
    %210 = vector.extract_strided_slice %205 {offsets = [0, 96], sizes = [2, 32], strides = [1, 1]} : vector<2x128xf32> to vector<2x32xf32>
    %211 = arith.mulf %208, %190 : vector<2x32xf32>
    %212 = arith.mulf %207, %209 : vector<2x32xf32>
    %213 = arith.addf %211, %212 : vector<2x32xf32>
    %214 = math.tanh %213 : vector<2x32xf32>
    %215 = arith.mulf %210, %214 : vector<2x32xf32>
    %216 = arith.truncf %215 : vector<2x32xf32> to vector<2x32xbf16>
    %cst_50 = arith.constant dense<0.000000e+00> : vector<2x32xf32>
    %217 = tpu.matmul %216, %33, %cst_50 {dimension_numbers = #tpu.dot_dimension_numbers<[1], [0], [0], [1], [0, 0, 1, 1], [], []>} : vector<2x32xbf16>, vector<32x32xbf16>, vector<2x32xf32> -> vector<2x32xf32>
    %218 = vector.broadcast %34 : vector<1x32xf32> to vector<2x32xf32>
    %219 = arith.addf %217, %218 : vector<2x32xf32>
    %220 = tpu.concatenate %58, %81, %104, %127, %150, %173, %196, %219 in 1 : vector<2x32xf32>, vector<2x32xf32>, vector<2x32xf32>, vector<2x32xf32>, vector<2x32xf32>, vector<2x32xf32>, vector<2x32xf32>, vector<2x32xf32> -> vector<2x256xf32>
    %c0_51 = arith.constant 0 : index
    %c0_52 = arith.constant 0 : index
    %221 = vector.load %arg13[%c0_51, %c0_52] : memref<2x256xf32, #tpu.memory_space<vmem>>, vector<2x256xf32>
    tpu.vector_store %arg13[%c0_51, %c0_52], %220 {strides = array<i32>} : memref<2x256xf32, #tpu.memory_space<vmem>>, vector<2x256xf32>,
    %c0_53 = arith.constant 0 : index
    %222 = memref.load %arg0[%c0_53] : memref<1xi32, #tpu.memory_space<smem>>
    %223 = tpu.iota {dimensions = array<i32: 0>} : vector<2x96xi32>
    %224 = tpu.iota {dimensions = array<i32: 1>} : vector<2x96xi32>
    %c96_i32 = arith.constant 96 : i32
    %225 = vector.broadcast %c96_i32 : i32 to vector<2x96xi32>
    %226 = arith.muli %223, %225 : vector<2x96xi32>
    %227 = arith.addi %226, %224 : vector<2x96xi32>
    %c16843009_i32 = arith.constant 16843009 : i32
    %228 = arith.muli %222, %c16843009_i32 : i32
    %229 = vector.broadcast %228 : i32 to vector<2x96xi32>
    %230 = arith.addi %227, %229 : vector<2x96xi32>
    %c1_i32 = arith.constant 1 : i32
    %231 = vector.broadcast %c1_i32 : i32 to vector<2x96xi32>
    %232 = arith.addi %230, %231 : vector<2x96xi32>
    %c16_i32 = arith.constant 16 : i32
    %233 = vector.broadcast %c16_i32 : i32 to vector<2x96xi32>
    %234 = arith.shrsi %232, %233 : vector<2x96xi32>
    %235 = arith.xori %234, %232 : vector<2x96xi32>
    %c73244475_i32 = arith.constant 73244475 : i32
    %236 = vector.broadcast %c73244475_i32 : i32 to vector<2x96xi32>
    %237 = arith.muli %235, %236 : vector<2x96xi32>
    %c16_i32_54 = arith.constant 16 : i32
    %238 = vector.broadcast %c16_i32_54 : i32 to vector<2x96xi32>
    %239 = arith.shrsi %237, %238 : vector<2x96xi32>
    %240 = arith.xori %239, %237 : vector<2x96xi32>
    %c73244475_i32_55 = arith.constant 73244475 : i32
    %241 = vector.broadcast %c73244475_i32_55 : i32 to vector<2x96xi32>
    %242 = arith.muli %240, %241 : vector<2x96xi32>
    %c16_i32_56 = arith.constant 16 : i32
    %243 = vector.broadcast %c16_i32_56 : i32 to vector<2x96xi32>
    %244 = arith.shrsi %242, %243 : vector<2x96xi32>
    %245 = arith.xori %244, %242 : vector<2x96xi32>
    %c16777215_i32 = arith.constant 16777215 : i32
    %246 = vector.broadcast %c16777215_i32 : i32 to vector<2x96xi32>
    %247 = arith.andi %245, %246 : vector<2x96xi32>
    %248 = arith.sitofp %247 : vector<2x96xi32> to vector<2x96xf32>
    %cst_57 = arith.constant 5.96046448E-8 : f32
    %249 = vector.broadcast %cst_57 : f32 to vector<2x96xf32>
    %250 = arith.mulf %248, %249 : vector<2x96xf32>
    %c0_58 = arith.constant 0 : index
    %c0_59 = arith.constant 0 : index
    %251 = vector.load %arg14[%c0_58, %c0_59] : memref<2x96xf32, #tpu.memory_space<vmem>>, vector<2x96xf32>
    tpu.vector_store %arg14[%c0_58, %c0_59], %250 {strides = array<i32>} : memref<2x96xf32, #tpu.memory_space<vmem>>, vector<2x96xf32>,
    return
  }
}

</mosaic_0001>

<llo_original>
// kernel: encdec_forward.1
$region0: #{encdec_forward.1}
  #allocation0 [shape = 'u32[]', space=smem, size = 0x4, offset = 0x4, fixed_abs, tag = 'smem constant byte address 0x4 - core index']
  #allocation1 [shape = 'u32[72,128]{1,0:T(1,128)}', space=vmem, size = 0x9000, scoped, tag = 'internal scratch']
  #allocation2 [shape = 's32[1]{0:T(128)S(6)}', space=smem, size = 0x200, scoped, tag = 'scoped memory for encdec_forward.1']
  %s0 = inlined_call_operand.<no memory space> [shape: s32[1], index: 0, kind: input, shape index: {}]
  %s1 = inlined_call_operand.vmem [shape: s32[16,1], index: 1, kind: input, shape index: {}]
  %s2 = inlined_call_operand.vmem [shape: s32[2,1], index: 2, kind: input, shape index: {}]
  %s3 = inlined_call_operand.vmem [shape: bf16[2,64], index: 3, kind: input, shape index: {}]
  %s4 = inlined_call_operand.vmem [shape: bf16[32,32], index: 4, kind: input, shape index: {}]
  %s5 = inlined_call_operand.vmem [shape: bf16[2,32], index: 5, kind: input, shape index: {}]
  %s6 = inlined_call_operand.vmem [shape: bf16[64,32], index: 6, kind: input, shape index: {}]
  %s7 = inlined_call_operand.vmem [shape: f32[1,32], index: 7, kind: input, shape index: {}]
  %s8 = inlined_call_operand.vmem [shape: bf16[32,128], index: 8, kind: input, shape index: {}]
  %s9 = inlined_call_operand.vmem [shape: bf16[32,128], index: 9, kind: input, shape index: {}]
  %s10 = inlined_call_operand.vmem [shape: f32[1,128], index: 10, kind: input, shape index: {}]
  %s11 = inlined_call_operand.vmem [shape: bf16[32,32], index: 11, kind: input, shape index: {}]
  %s12 = inlined_call_operand.vmem [shape: f32[1,32], index: 12, kind: input, shape index: {}]
  %s13 = inlined_call_operand.vmem [shape: f32[2,256], index: 13, kind: output, shape index: {0}]
  %s14 = inlined_call_operand.vmem [shape: f32[2,96], index: 14, kind: output, shape index: {1}]
  %15 = xla_tuple %s13, %s14
  %s16 = sld [smem:[#allocation0]]
  $region70: #{encdec_forward.1} parent=0
    _
  %s18 = ssub.s32 1, %s16
  %s19 = scalar_select 0, %s18, %s16
  %20 = sst [smem:[#allocation2]] %s0
  // Predicated region
  $region2: #{encdec_forward.1} parent=0 // pred_check
    _
  $region3: #{encdec_forward.1} parent=0 // pred_check_branch
    %22 = sbr.rel (0) target = $region5
  $region4: #{encdec_forward.1} parent=0 // pred_region
    _
  $region5: #{encdec_forward.1} parent=0 // pred_fallthru
    _
  // Predicated region
  $region6: #{encdec_forward.1} parent=0 // pred_check
    _
  $region7: #{encdec_forward.1} parent=0 // pred_check_branch
    %24 = sbr.rel (0) target = $region9
  $region8: #{encdec_forward.1} parent=0 // pred_region
    _
  $region9: #{encdec_forward.1} parent=0 // pred_fallthru
    _
  // Predicated region
  $region10: #{encdec_forward.1} parent=0 // pred_check
    _
  $region11: #{encdec_forward.1} parent=0 // pred_check_branch
    %26 = sbr.rel (0) target = $region13
  $region12: #{encdec_forward.1} parent=0 // pred_region
    _
  $region13: #{encdec_forward.1} parent=0 // pred_fallthru
    _
  // Predicated region
  $region14: #{encdec_forward.1} parent=0 // pred_check
    _
  $region15: #{encdec_forward.1} parent=0 // pred_check_branch
    %28 = sbr.rel (0) target = $region17
  $region16: #{encdec_forward.1} parent=0 // pred_region
    _
  $region17: #{encdec_forward.1} parent=0 // pred_fallthru
    _
  // Predicated region
  $region18: #{encdec_forward.1} parent=0 // pred_check
    _
  $region19: #{encdec_forward.1} parent=0 // pred_check_branch
    %30 = sbr.rel (0) target = $region21
  $region20: #{encdec_forward.1} parent=0 // pred_region
    _
  $region21: #{encdec_forward.1} parent=0 // pred_fallthru
    _
  // Predicated region
  $region22: #{encdec_forward.1} parent=0 // pred_check
    _
  $region23: #{encdec_forward.1} parent=0 // pred_check_branch
    %32 = sbr.rel (0) target = $region25
  $region24: #{encdec_forward.1} parent=0 // pred_region
    _
  $region25: #{encdec_forward.1} parent=0 // pred_fallthru
    _
  // Predicated region
  $region26: #{encdec_forward.1} parent=0 // pred_check
    _
  $region27: #{encdec_forward.1} parent=0 // pred_check_branch
    %34 = sbr.rel (0) target = $region29
  $region28: #{encdec_forward.1} parent=0 // pred_region
    _
  $region29: #{encdec_forward.1} parent=0 // pred_fallthru
    _
  // Predicated region
  $region30: #{encdec_forward.1} parent=0 // pred_check
    _
  $region31: #{encdec_forward.1} parent=0 // pred_check_branch
    %36 = sbr.rel (0) target = $region33
  $region32: #{encdec_forward.1} parent=0 // pred_region
    _
  $region33: #{encdec_forward.1} parent=0 // pred_fallthru
    _
  // Predicated region
  $region34: #{encdec_forward.1} parent=0 // pred_check
    _
  $region35: #{encdec_forward.1} parent=0 // pred_check_branch
    %38 = sbr.rel (0) target = $region37
  $region36: #{encdec_forward.1} parent=0 // pred_region
    _
  $region37: #{encdec_forward.1} parent=0 // pred_fallthru
    _
  // Predicated region
  $region38: #{encdec_forward.1} parent=0 // pred_check
    _
  $region39: #{encdec_forward.1} parent=0 // pred_check_branch
    %40 = sbr.rel (0) target = $region41
  $region40: #{encdec_forward.1} parent=0 // pred_region
    _
  $region41: #{encdec_forward.1} parent=0 // pred_fallthru
    _
  // Predicated region
  $region42: #{encdec_forward.1} parent=0 // pred_check
    _
  $region43: #{encdec_forward.1} parent=0 // pred_check_branch
    %42 = sbr.rel (0) target = $region45
  $region44: #{encdec_forward.1} parent=0 // pred_region
    _
  $region45: #{encdec_forward.1} parent=0 // pred_fallthru
    _
  // Predicated region
  $region46: #{encdec_forward.1} parent=0 // pred_check
    _
  $region47: #{encdec_forward.1} parent=0 // pred_check_branch
    %44 = sbr.rel (0) target = $region49
  $region48: #{encdec_forward.1} parent=0 // pred_region
    _
  $region49: #{encdec_forward.1} parent=0 // pred_fallthru
    _
  // Predicated region
  $region50: #{encdec_forward.1} parent=0 // pred_check
    _
  $region51: #{encdec_forward.1} parent=0 // pred_check_branch
    %46 = sbr.rel (0) target = $region53
  $region52: #{encdec_forward.1} parent=0 // pred_region
    _
  $region53: #{encdec_forward.1} parent=0 // pred_fallthru
    _
  %v48 = vld [vmem:[%s3] sm:$0x1]
  %v49 = vld [vmem:[%s6] sm:$0xf]
  %v50 = vld [vmem:[%s6 + $0x4] sm:$0xf]
  %v51 = vld [vmem:[%s6 + $0x8] sm:$0xf]
  %v52 = vld [vmem:[%s6 + $0xc] sm:$0xf]
  %v53 = vld [vmem:[%s6 + $0x10] sm:$0xf]
  %v54 = vld [vmem:[%s6 + $0x14] sm:$0xf]
  %v55 = vld [vmem:[%s6 + $0x18] sm:$0xf]
  %v56 = vld [vmem:[%s6 + $0x1c] sm:$0xf]
  %v57 = vld [vmem:[%s7] sm:$0x1]
  %v59 = vperm.slane %v57, 0
  %v69 = vunpack.c.l.b16 %v49
  %v70 = vunpack.c.l.b16 %v50
  %v71 = vunpack.c.l.b16 %v51
  %v72 = vunpack.c.l.b16 %v52
  %v73 = vunpack.c.l.b16 %v53
  %v74 = vunpack.c.l.b16 %v54
  %v75 = vunpack.c.l.b16 %v55
  %v76 = vunpack.c.l.b16 %v56
  %v77 = vpack.c.b16 %v70, %v69
  %v78 = vpack.c.b16 %v72, %v71
  %v79 = vpack.c.b16 %v74, %v73
  %v80 = vpack.c.b16 %v76, %v75
  %vm85 = vcmask 523264
  %v87 = vsel %vm85, %v48, 0
  %89 = vmatpush.bf16.msra.mxu0 0
  %90 = vmatpush.bf16.msra.mxu0 0
  %91 = vmatpush.bf16.msra.mxu0 0
  %92 = vmatpush.bf16.msra.mxu0 0
  %93 = vmatpush.bf16.msra.mxu0 %v80
  %94 = vmatpush.bf16.msra.mxu0 %v79
  %95 = vmatpush.bf16.msra.mxu0 %v78
  %96 = vmatpush.bf16.msra.mxu0 %v77
  %97 = vmatmul.bf16.gmra.mxu0 %v87
  %v98 = vpop.f32.mrf.mxu0
  %v99 = vadd.f32 %v59, %v98
  %v100 = vpop.f32.mrf.mxu0
  %101 = vdwg.mxu0
  %v102 = vmax.f32 %v99, 0.0
  %v103 = vld [vmem:[%s1] sm:$0xff]
  %v104 = vld [vmem:[%s1 + $0x8] sm:$0xff]
  %v105 = vld [vmem:[%s2] sm:$0x3]
  %v106 = vrot.slane %v105, 6
  %v107 = vrot.slane %v105, 4
  %v108 = vrot.slane %v105, 2
  %vm109 = vcmask 1041408
  %v110 = vsel %vm109, %v105, %v106
  %vm111 = vcmask 1043456
  %v112 = vsel %vm111, %v110, %v107
  %vm113 = vcmask 1045504
  %v114 = vsel %vm113, %v112, %v108
  %v115 = vlaneseq
  %v116 = vand.u32 %v115, 127
  %117 = vset.pattern.permute.xlu0 0
  %118 = vperm.xlu0 %117, %v103
  %v119 = vpop.permute.xlu0 %118
  %120 = vset.pattern.permute.xlu0 0
  %121 = vperm.xlu0 %120, %v104
  %v122 = vpop.permute.xlu0 %121
  %vm123 = vcmp.eq.s32.totalorder %v116, %v119
  %vm124 = vcmp.eq.s32.totalorder %v116, %v122
  %v125 = vadd.s32 %v114, 32
  %126 = vset.pattern.permute.xlu0 0
  %127 = vperm.xlu0 %126, %v125
  %v128 = vpop.permute.xlu0 %127
  %vm129 = vcmp.eq.s32.totalorder %v116, %v128
  %vm130 = vmor %vm123, %vm129
  %vm131 = vmor %vm124, %vm129
  %v132 = vsel %vm130, 1, 0
  %v133 = vsel %vm131, 1, 0
  %v134 = vcvt.s32.f32 %v132
  %v135 = vcvt.s32.f32 %v133
  %v136 = vpack.c.bf16 %v135, %v134
  %v137 = vld [vmem:[%s4] sm:$0xf]
  %v138 = vld [vmem:[%s4 + $0x4] sm:$0xf]
  %v139 = vld [vmem:[%s4 + $0x8] sm:$0xf]
  %v140 = vld [vmem:[%s4 + $0xc] sm:$0xf]
  %v141 = vld [vmem:[%s5] sm:$0x1]
  %v146 = vunpack.c.l.b16 %v137
  %v147 = vunpack.c.l.b16 %v138
  %v148 = vunpack.c.l.b16 %v139
  %v149 = vunpack.c.l.b16 %v140
  %v150 = vpack.c.b16 %v147, %v146
  %v151 = vpack.c.b16 %v149, %v148
  %vm154 = vcmask 277504
  %v156 = vsel %vm154, %v136, 0
  %vm158 = vcmask 1040384
  %v160 = vsel %vm158, %v141, 0
  %162 = vmatpush.bf16.msra.mxu0 0
  %163 = vmatpush.bf16.msra.mxu0 0
  %164 = vmatpush.bf16.msra.mxu0 0
  %165 = vmatpush.bf16.msra.mxu0 0
  %166 = vmatpush.bf16.msra.mxu0 0
  %167 = vmatpush.bf16.msra.mxu0 %v160
  %168 = vmatpush.bf16.msra.mxu0 %v151
  %169 = vmatpush.bf16.msra.mxu0 %v150
  %170 = vmatmul.bf16.gmra.mxu0 %v156
  %v171 = vpop.f32.mrf.mxu0
  %v172 = vadd.f32 0.0, %v171
  %v173 = vpop.f32.mrf.mxu0
  %v174 = vadd.f32 0.0, %v173
  %175 = vdwg.mxu0
  %v176 = vpack.c.bf16 %v174, %v172
  %v177 = vld [vmem:[%s8] sm:$0xf]
  %v178 = vld [vmem:[%s8 + $0x4] sm:$0xf]
  %v179 = vld [vmem:[%s8 + $0x8] sm:$0xf]
  %v180 = vld [vmem:[%s8 + $0xc] sm:$0xf]
  %v181 = vld [vmem:[%s10] sm:$0x1]
  %v183 = vperm.slane %v181, 0
  %v189 = vunpack.c.l.b16 %v177
  %v190 = vunpack.c.l.b16 %v178
  %v191 = vunpack.c.l.b16 %v179
  %v192 = vunpack.c.l.b16 %v180
  %v193 = vpack.c.b16 %v190, %v189
  %v194 = vpack.c.b16 %v192, %v191
  %vm197 = vcmask 261120
  %v199 = vsel %vm197, %v176, 0
  %201 = vmatpush.bf16.msra.mxu0 0
  %202 = vmatpush.bf16.msra.mxu0 0
  %203 = vmatpush.bf16.msra.mxu0 0
  %204 = vmatpush.bf16.msra.mxu0 0
  %205 = vmatpush.bf16.msra.mxu0 0
  %206 = vmatpush.bf16.msra.mxu0 0
  %207 = vmatpush.bf16.msra.mxu0 %v194
  %208 = vmatpush.bf16.msra.mxu0 %v193
  %209 = vmatmul.bf16.gmra.mxu0 %v199
  %v210 = vpop.f32.mrf.mxu0
  %v211 = vadd.f32 %v183, %v210
  %v212 = vpop.f32.mrf.mxu0
  %v213 = vadd.f32 %v183, %v212
  %214 = vdwg.mxu0
  %v215 = vld [vmem:[%s9] sm:$0xf]
  %v216 = vld [vmem:[%s9 + $0x4] sm:$0xf]
  %v217 = vld [vmem:[%s9 + $0x8] sm:$0xf]
  %v218 = vld [vmem:[%s9 + $0xc] sm:$0xf]
  %v219 = vld [vmem:[%s11] sm:$0xf]
  %v220 = vld [vmem:[%s11 + $0x4] sm:$0xf]
  %v221 = vld [vmem:[%s11 + $0x8] sm:$0xf]
  %v222 = vld [vmem:[%s11 + $0xc] sm:$0xf]
  %v223 = vld [vmem:[%s12] sm:$0x1]
  %v224 = vpack.c.bf16 %v102, %v102
  %v229 = vunpack.c.l.b16 %v215
  %v230 = vunpack.c.l.b16 %v216
  %v231 = vunpack.c.l.b16 %v217
  %v232 = vunpack.c.l.b16 %v218
  %v233 = vpack.c.b16 %v230, %v229
  %v234 = vpack.c.b16 %v232, %v231
  %v238 = vsel %vm197, %v224, 0
  %240 = vmatpush.bf16.msra.mxu0 0
  %241 = vmatpush.bf16.msra.mxu0 0
  %242 = vmatpush.bf16.msra.mxu0 0
  %243 = vmatpush.bf16.msra.mxu0 0
  %244 = vmatpush.bf16.msra.mxu0 0
  %245 = vmatpush.bf16.msra.mxu0 0
  %246 = vmatpush.bf16.msra.mxu0 %v234
  %247 = vmatpush.bf16.msra.mxu0 %v233
  %248 = vmatmul.bf16.gmra.mxu0 %v238
  %v249 = vpop.f32.mrf.mxu0
  %v250 = vadd.f32 0.0, %v249
  %v251 = vpop.f32.mrf.mxu0
  %252 = vdwg.mxu0
  %v253 = vadd.f32 %v211, %v250
  %v254 = vxor.u32 %v253, 2147483648
  %v255 = vmul.f32 %v254, 1.442695
  %v256 = vpow.pop %v255
  %v257 = vadd.f32 %v256, 1.0
  %v258 = vrcp.pop %v257
  %v259 = vmul.f32 %v257, %v258
  %v260 = vsub.f32 1.0, %v259
  %v261 = vmul.f32 %v258, %v260
  %v262 = vadd.f32 %v258, %v261
  %vm263 = vweird.f32 %v257
  %vm264 = vweird.f32 %v258
  %vm265 = vmor %vm263, %vm264
  %v266 = vsel %vm265, %v258, %v262
  %v267 = vand.u32 2147483647, %v257
  %vm268 = vcmp.eq.f32.partialorder %v267, 8.507059e+37
  %v269 = vand.u32 %v257, 2147483648
  %v270 = vor.u32 1.1754944e-38, %v269
  %v271 = vsel %vm268, %v270, %v266
  %v272 = vmul.f32 1.0, %v271
  %v273 = vtanh.pop %v253
  %v274 = vmul.f32 %v272, 0.0
  %276 = vrot.lane.b32.xlu0 %v273, 64
  %v277 = vpop.permute.xlu0 %276
  %v279 = vmul.f32 %v272, %v277
  %281 = vrot.lane.b32.xlu0 %v279, 32
  %v282 = vpop.permute.xlu0 %281
  %v284 = vadd.f32 %v274, %v282
  %v285 = vtanh.pop %v284
  %287 = vrot.lane.b32.xlu0 %v285, 64
  %v288 = vpop.permute.xlu0 %287
  %v290 = vmul.f32 %v272, %v288
  %v291 = vpack.c.bf16 %v290, %v290
  %v293 = vperm.slane %v223, 0
  %296 = vrot.lane.b32.xlu0 %v291, 32
  %v297 = vpop.permute.xlu0 %296
  %v302 = vunpack.c.l.b16 %v219
  %v303 = vunpack.c.l.b16 %v220
  %v304 = vunpack.c.l.b16 %v221
  %v305 = vunpack.c.l.b16 %v222
  %v306 = vpack.c.b16 %v303, %v302
  %v307 = vpack.c.b16 %v305, %v304
  %v311 = vsel %vm197, %v297, 0
  %313 = vmatpush.bf16.msra.mxu0 0
  %314 = vmatpush.bf16.msra.mxu0 0
  %315 = vmatpush.bf16.msra.mxu0 0
  %316 = vmatpush.bf16.msra.mxu0 0
  %317 = vmatpush.bf16.msra.mxu0 0
  %318 = vmatpush.bf16.msra.mxu0 0
  %319 = vmatpush.bf16.msra.mxu0 %v307
  %320 = vmatpush.bf16.msra.mxu0 %v306
  %321 = vmatmul.bf16.gmra.mxu0 %v311
  %v322 = vpop.f32.mrf.mxu0
  %v323 = vadd.f32 %v293, %v322
  %v324 = vpop.f32.mrf.mxu0
  %325 = vdwg.mxu0
  %326 = vmatpush.bf16.msra.mxu0 0
  %327 = vmatpush.bf16.msra.mxu0 0
  %328 = vmatpush.bf16.msra.mxu0 0
  %329 = vmatpush.bf16.msra.mxu0 0
  %330 = vmatpush.bf16.msra.mxu0 0
  %331 = vmatpush.bf16.msra.mxu0 0
  %332 = vmatpush.bf16.msra.mxu0 %v234
  %333 = vmatpush.bf16.msra.mxu0 %v233
  %334 = vmatmul.bf16.gmra.mxu0 %v311
  %v335 = vpop.f32.mrf.mxu0
  %v336 = vadd.f32 0.0, %v335
  %v337 = vpop.f32.mrf.mxu0
  %338 = vdwg.mxu0
  %v340 = vrot.slane %v336, 6
  %v342 = vadd.f32 %v211, %v340
  %v343 = vxor.u32 %v342, 2147483648
  %v344 = vmul.f32 %v343, 1.442695
  %v345 = vpow.pop %v344
  %v346 = vadd.f32 %v345, 1.0
  %v347 = vrcp.pop %v346
  %v348 = vmul.f32 %v346, %v347
  %v349 = vsub.f32 1.0, %v348
  %v350 = vmul.f32 %v347, %v349
  %v351 = vadd.f32 %v347, %v350
  %vm352 = vweird.f32 %v346
  %vm353 = vweird.f32 %v347
  %vm354 = vmor %vm352, %vm353
  %v355 = vsel %vm354, %v347, %v351
  %v356 = vand.u32 2147483647, %v346
  %vm357 = vcmp.eq.f32.partialorder %v356, 8.507059e+37
  %v358 = vand.u32 %v346, 2147483648
  %v359 = vor.u32 1.1754944e-38, %v358
  %v360 = vsel %vm357, %v359, %v355
  %v361 = vmul.f32 1.0, %v360
  %v362 = vtanh.pop %v342
  %v364 = vrot.slane %v284, 6
  %v366 = vmul.f32 %v361, %v364
  %368 = vrot.lane.b32.xlu0 %v362, 64
  %v369 = vpop.permute.xlu0 %368
  %v371 = vmul.f32 %v361, %v369
  %373 = vrot.lane.b32.xlu0 %v371, 32
  %v374 = vpop.permute.xlu0 %373
  %v376 = vadd.f32 %v366, %v374
  %v377 = vtanh.pop %v376
  %379 = vrot.lane.b32.xlu0 %v377, 64
  %v380 = vpop.permute.xlu0 %379
  %v382 = vmul.f32 %v361, %v380
  %v383 = vpack.c.bf16 %v382, %v382
  %v385 = vrot.slane %v383, 1
  %386 = vrot.lane.b32.xlu0 %v385, 32
  %v387 = vpop.permute.xlu0 %386
  %v389 = vsel %vm197, %v387, 0
  %391 = vmatpush.bf16.msra.mxu0 0
  %392 = vmatpush.bf16.msra.mxu0 0
  %393 = vmatpush.bf16.msra.mxu0 0
  %394 = vmatpush.bf16.msra.mxu0 0
  %395 = vmatpush.bf16.msra.mxu0 0
  %396 = vmatpush.bf16.msra.mxu0 0
  %397 = vmatpush.bf16.msra.mxu0 %v307
  %398 = vmatpush.bf16.msra.mxu0 %v306
  %399 = vmatmul.bf16.gmra.mxu0 %v389
  %v400 = vpop.f32.mrf.mxu0
  %v401 = vadd.f32 %v293, %v400
  %v402 = vpop.f32.mrf.mxu0
  %403 = vdwg.mxu0
  %404 = vmatpush.bf16.msra.mxu0 0
  %405 = vmatpush.bf16.msra.mxu0 0
  %406 = vmatpush.bf16.msra.mxu0 0
  %407 = vmatpush.bf16.msra.mxu0 0
  %408 = vmatpush.bf16.msra.mxu0 0
  %409 = vmatpush.bf16.msra.mxu0 0
  %410 = vmatpush.bf16.msra.mxu0 %v234
  %411 = vmatpush.bf16.msra.mxu0 %v233
  %412 = vmatmul.bf16.gmra.mxu0 %v389
  %v413 = vpop.f32.mrf.mxu0
  %v414 = vadd.f32 0.0, %v413
  %v415 = vpop.f32.mrf.mxu0
  %416 = vdwg.mxu0
  %v418 = vrot.slane %v414, 4
  %v420 = vadd.f32 %v211, %v418
  %v421 = vxor.u32 %v420, 2147483648
  %v422 = vmul.f32 %v421, 1.442695
  %v423 = vpow.pop %v422
  %v424 = vadd.f32 %v423, 1.0
  %v425 = vrcp.pop %v424
  %v426 = vmul.f32 %v424, %v425
  %v427 = vsub.f32 1.0, %v426
  %v428 = vmul.f32 %v425, %v427
  %v429 = vadd.f32 %v425, %v428
  %vm430 = vweird.f32 %v424
  %vm431 = vweird.f32 %v425
  %vm432 = vmor %vm430, %vm431
  %v433 = vsel %vm432, %v425, %v429
  %v434 = vand.u32 2147483647, %v424
  %vm435 = vcmp.eq.f32.partialorder %v434, 8.507059e+37
  %v436 = vand.u32 %v424, 2147483648
  %v437 = vor.u32 1.1754944e-38, %v436
  %v438 = vsel %vm435, %v437, %v433
  %v439 = vmul.f32 1.0, %v438
  %v440 = vtanh.pop %v420
  %v442 = vrot.slane %v376, 6
  %v444 = vmul.f32 %v439, %v442
  %446 = vrot.lane.b32.xlu0 %v440, 64
  %v447 = vpop.permute.xlu0 %446
  %v449 = vmul.f32 %v439, %v447
  %451 = vrot.lane.b32.xlu0 %v449, 32
  %v452 = vpop.permute.xlu0 %451
  %v454 = vadd.f32 %v444, %v452
  %v455 = vtanh.pop %v454
  %457 = vrot.lane.b32.xlu0 %v455, 64
  %v458 = vpop.permute.xlu0 %457
  %v460 = vmul.f32 %v439, %v458
  %v461 = vpack.c.bf16 %v460, %v460
  %v463 = vrot.slane %v461, 2
  %464 = vrot.lane.b32.xlu0 %v463, 32
  %v465 = vpop.permute.xlu0 %464
  %v467 = vsel %vm197, %v465, 0
  %469 = vmatpush.bf16.msra.mxu0 0
  %470 = vmatpush.bf16.msra.mxu0 0
  %471 = vmatpush.bf16.msra.mxu0 0
  %472 = vmatpush.bf16.msra.mxu0 0
  %473 = vmatpush.bf16.msra.mxu0 0
  %474 = vmatpush.bf16.msra.mxu0 0
  %475 = vmatpush.bf16.msra.mxu0 %v307
  %476 = vmatpush.bf16.msra.mxu0 %v306
  %477 = vmatmul.bf16.gmra.mxu0 %v467
  %v478 = vpop.f32.mrf.mxu0
  %v479 = vadd.f32 %v293, %v478
  %v480 = vpop.f32.mrf.mxu0
  %481 = vdwg.mxu0
  %482 = vmatpush.bf16.msra.mxu0 0
  %483 = vmatpush.bf16.msra.mxu0 0
  %484 = vmatpush.bf16.msra.mxu0 0
  %485 = vmatpush.bf16.msra.mxu0 0
  %486 = vmatpush.bf16.msra.mxu0 0
  %487 = vmatpush.bf16.msra.mxu0 0
  %488 = vmatpush.bf16.msra.mxu0 %v234
  %489 = vmatpush.bf16.msra.mxu0 %v233
  %490 = vmatmul.bf16.gmra.mxu0 %v467
  %v491 = vpop.f32.mrf.mxu0
  %v492 = vadd.f32 0.0, %v491
  %v493 = vpop.f32.mrf.mxu0
  %494 = vdwg.mxu0
  %v496 = vrot.slane %v492, 2
  %v498 = vadd.f32 %v211, %v496
  %v499 = vxor.u32 %v498, 2147483648
  %v500 = vmul.f32 %v499, 1.442695
  %v501 = vpow.pop %v500
  %v502 = vadd.f32 %v501, 1.0
  %v503 = vrcp.pop %v502
  %v504 = vmul.f32 %v502, %v503
  %v505 = vsub.f32 1.0, %v504
  %v506 = vmul.f32 %v503, %v505
  %v507 = vadd.f32 %v503, %v506
  %vm508 = vweird.f32 %v502
  %vm509 = vweird.f32 %v503
  %vm510 = vmor %vm508, %vm509
  %v511 = vsel %vm510, %v503, %v507
  %v512 = vand.u32 2147483647, %v502
  %vm513 = vcmp.eq.f32.partialorder %v512, 8.507059e+37
  %v514 = vand.u32 %v502, 2147483648
  %v515 = vor.u32 1.1754944e-38, %v514
  %v516 = vsel %vm513, %v515, %v511
  %v517 = vmul.f32 1.0, %v516
  %v518 = vtanh.pop %v498
  %v520 = vrot.slane %v454, 6
  %v522 = vmul.f32 %v517, %v520
  %524 = vrot.lane.b32.xlu0 %v518, 64
  %v525 = vpop.permute.xlu0 %524
  %v527 = vmul.f32 %v517, %v525
  %529 = vrot.lane.b32.xlu0 %v527, 32
  %v530 = vpop.permute.xlu0 %529
  %v532 = vadd.f32 %v522, %v530
  %v533 = vtanh.pop %v532
  %535 = vrot.lane.b32.xlu0 %v533, 64
  %v536 = vpop.permute.xlu0 %535
  %v538 = vmul.f32 %v517, %v536
  %v539 = vpack.c.bf16 %v538, %v538
  %v541 = vrot.slane %v539, 3
  %542 = vrot.lane.b32.xlu0 %v541, 32
  %v543 = vpop.permute.xlu0 %542
  %v545 = vsel %vm197, %v543, 0
  %547 = vmatpush.bf16.msra.mxu0 0
  %548 = vmatpush.bf16.msra.mxu0 0
  %549 = vmatpush.bf16.msra.mxu0 0
  %550 = vmatpush.bf16.msra.mxu0 0
  %551 = vmatpush.bf16.msra.mxu0 0
  %552 = vmatpush.bf16.msra.mxu0 0
  %553 = vmatpush.bf16.msra.mxu0 %v307
  %554 = vmatpush.bf16.msra.mxu0 %v306
  %555 = vmatmul.bf16.gmra.mxu0 %v545
  %v556 = vpop.f32.mrf.mxu0
  %v557 = vadd.f32 %v293, %v556
  %v558 = vpop.f32.mrf.mxu0
  %559 = vdwg.mxu0
  %560 = vmatpush.bf16.msra.mxu0 0
  %561 = vmatpush.bf16.msra.mxu0 0
  %562 = vmatpush.bf16.msra.mxu0 0
  %563 = vmatpush.bf16.msra.mxu0 0
  %564 = vmatpush.bf16.msra.mxu0 0
  %565 = vmatpush.bf16.msra.mxu0 0
  %566 = vmatpush.bf16.msra.mxu0 %v234
  %567 = vmatpush.bf16.msra.mxu0 %v233
  %568 = vmatmul.bf16.gmra.mxu0 %v545
  %v569 = vpop.f32.mrf.mxu0
  %v570 = vadd.f32 0.0, %v569
  %v571 = vpop.f32.mrf.mxu0
  %572 = vdwg.mxu0
  %v573 = vadd.f32 %v213, %v570
  %v574 = vxor.u32 %v573, 2147483648
  %v575 = vmul.f32 %v574, 1.442695
  %v576 = vpow.pop %v575
  %v577 = vadd.f32 %v576, 1.0
  %v578 = vrcp.pop %v577
  %v579 = vmul.f32 %v577, %v578
  %v580 = vsub.f32 1.0, %v579
  %v581 = vmul.f32 %v578, %v580
  %v582 = vadd.f32 %v578, %v581
  %vm583 = vweird.f32 %v577
  %vm584 = vweird.f32 %v578
  %vm585 = vmor %vm583, %vm584
  %v586 = vsel %vm585, %v578, %v582
  %v587 = vand.u32 2147483647, %v577
  %vm588 = vcmp.eq.f32.partialorder %v587, 8.507059e+37
  %v589 = vand.u32 %v577, 2147483648
  %v590 = vor.u32 1.1754944e-38, %v589
  %v591 = vsel %vm588, %v590, %v586
  %v592 = vmul.f32 1.0, %v591
  %v593 = vtanh.pop %v573
  %v595 = vrot.slane %v532, 6
  %v597 = vmul.f32 %v592, %v595
  %599 = vrot.lane.b32.xlu0 %v593, 64
  %v600 = vpop.permute.xlu0 %599
  %v602 = vmul.f32 %v592, %v600
  %604 = vrot.lane.b32.xlu0 %v602, 32
  %v605 = vpop.permute.xlu0 %604
  %v607 = vadd.f32 %v597, %v605
  %v608 = vtanh.pop %v607
  %610 = vrot.lane.b32.xlu0 %v608, 64
  %v611 = vpop.permute.xlu0 %610
  %v613 = vmul.f32 %v592, %v611
  %v614 = vpack.c.bf16 %v613, %v613
  %616 = vrot.lane.b32.xlu0 %v614, 32
  %v617 = vpop.permute.xlu0 %616
  %v619 = vsel %vm197, %v617, 0
  %621 = vmatpush.bf16.msra.mxu0 0
  %622 = vmatpush.bf16.msra.mxu0 0
  %623 = vmatpush.bf16.msra.mxu0 0
  %624 = vmatpush.bf16.msra.mxu0 0
  %625 = vmatpush.bf16.msra.mxu0 0
  %626 = vmatpush.bf16.msra.mxu0 0
  %627 = vmatpush.bf16.msra.mxu0 %v307
  %628 = vmatpush.bf16.msra.mxu0 %v306
  %629 = vmatmul.bf16.gmra.mxu0 %v619
  %v630 = vpop.f32.mrf.mxu0
  %v631 = vadd.f32 %v293, %v630
  %v632 = vpop.f32.mrf.mxu0
  %633 = vdwg.mxu0
  %634 = vmatpush.bf16.msra.mxu0 0
  %635 = vmatpush.bf16.msra.mxu0 0
  %636 = vmatpush.bf16.msra.mxu0 0
  %637 = vmatpush.bf16.msra.mxu0 0
  %638 = vmatpush.bf16.msra.mxu0 0
  %639 = vmatpush.bf16.msra.mxu0 0
  %640 = vmatpush.bf16.msra.mxu0 %v234
  %641 = vmatpush.bf16.msra.mxu0 %v233
  %642 = vmatmul.bf16.gmra.mxu0 %v619
  %v643 = vpop.f32.mrf.mxu0
  %v644 = vadd.f32 0.0, %v643
  %v645 = vpop.f32.mrf.mxu0
  %646 = vdwg.mxu0
  %v648 = vrot.slane %v644, 6
  %v650 = vadd.f32 %v213, %v648
  %v651 = vxor.u32 %v650, 2147483648
  %v652 = vmul.f32 %v651, 1.442695
  %v653 = vpow.pop %v652
  %v654 = vadd.f32 %v653, 1.0
  %v655 = vrcp.pop %v654
  %v656 = vmul.f32 %v654, %v655
  %v657 = vsub.f32 1.0, %v656
  %v658 = vmul.f32 %v655, %v657
  %v659 = vadd.f32 %v655, %v658
  %vm660 = vweird.f32 %v654
  %vm661 = vweird.f32 %v655
  %vm662 = vmor %vm660, %vm661
  %v663 = vsel %vm662, %v655, %v659
  %v664 = vand.u32 2147483647, %v654
  %vm665 = vcmp.eq.f32.partialorder %v664, 8.507059e+37
  %v666 = vand.u32 %v654, 2147483648
  %v667 = vor.u32 1.1754944e-38, %v666
  %v668 = vsel %vm665, %v667, %v663
  %v669 = vmul.f32 1.0, %v668
  %v670 = vtanh.pop %v650
  %v672 = vrot.slane %v607, 6
  %v674 = vmul.f32 %v669, %v672
  %676 = vrot.lane.b32.xlu0 %v670, 64
  %v677 = vpop.permute.xlu0 %676
  %v679 = vmul.f32 %v669, %v677
  %681 = vrot.lane.b32.xlu0 %v679, 32
  %v682 = vpop.permute.xlu0 %681
  %v684 = vadd.f32 %v674, %v682
  %v685 = vtanh.pop %v684
  %687 = vrot.lane.b32.xlu0 %v685, 64
  %v688 = vpop.permute.xlu0 %687
  %v690 = vmul.f32 %v669, %v688
  %v691 = vpack.c.bf16 %v690, %v690
  %v693 = vrot.slane %v691, 1
  %694 = vrot.lane.b32.xlu0 %v693, 32
  %v695 = vpop.permute.xlu0 %694
  %v697 = vsel %vm197, %v695, 0
  %699 = vmatpush.bf16.msra.mxu0 0
  %700 = vmatpush.bf16.msra.mxu0 0
  %701 = vmatpush.bf16.msra.mxu0 0
  %702 = vmatpush.bf16.msra.mxu0 0
  %703 = vmatpush.bf16.msra.mxu0 0
  %704 = vmatpush.bf16.msra.mxu0 0
  %705 = vmatpush.bf16.msra.mxu0 %v307
  %706 = vmatpush.bf16.msra.mxu0 %v306
  %707 = vmatmul.bf16.gmra.mxu0 %v697
  %v708 = vpop.f32.mrf.mxu0
  %v709 = vadd.f32 %v293, %v708
  %v710 = vpop.f32.mrf.mxu0
  %711 = vdwg.mxu0
  %712 = vmatpush.bf16.msra.mxu0 0
  %713 = vmatpush.bf16.msra.mxu0 0
  %714 = vmatpush.bf16.msra.mxu0 0
  %715 = vmatpush.bf16.msra.mxu0 0
  %716 = vmatpush.bf16.msra.mxu0 0
  %717 = vmatpush.bf16.msra.mxu0 0
  %718 = vmatpush.bf16.msra.mxu0 %v234
  %719 = vmatpush.bf16.msra.mxu0 %v233
  %720 = vmatmul.bf16.gmra.mxu0 %v697
  %v721 = vpop.f32.mrf.mxu0
  %v722 = vadd.f32 0.0, %v721
  %v723 = vpop.f32.mrf.mxu0
  %724 = vdwg.mxu0
  %v726 = vrot.slane %v722, 4
  %v728 = vadd.f32 %v213, %v726
  %v729 = vxor.u32 %v728, 2147483648
  %v730 = vmul.f32 %v729, 1.442695
  %v731 = vpow.pop %v730
  %v732 = vadd.f32 %v731, 1.0
  %v733 = vrcp.pop %v732
  %v734 = vmul.f32 %v732, %v733
  %v735 = vsub.f32 1.0, %v734
  %v736 = vmul.f32 %v733, %v735
  %v737 = vadd.f32 %v733, %v736
  %vm738 = vweird.f32 %v732
  %vm739 = vweird.f32 %v733
  %vm740 = vmor %vm738, %vm739
  %v741 = vsel %vm740, %v733, %v737
  %v742 = vand.u32 2147483647, %v732
  %vm743 = vcmp.eq.f32.partialorder %v742, 8.507059e+37
  %v744 = vand.u32 %v732, 2147483648
  %v745 = vor.u32 1.1754944e-38, %v744
  %v746 = vsel %vm743, %v745, %v741
  %v747 = vmul.f32 1.0, %v746
  %v748 = vtanh.pop %v728
  %v750 = vrot.slane %v684, 6
  %v752 = vmul.f32 %v747, %v750
  %754 = vrot.lane.b32.xlu0 %v748, 64
  %v755 = vpop.permute.xlu0 %754
  %v757 = vmul.f32 %v747, %v755
  %759 = vrot.lane.b32.xlu0 %v757, 32
  %v760 = vpop.permute.xlu0 %759
  %v762 = vadd.f32 %v752, %v760
  %v763 = vtanh.pop %v762
  %765 = vrot.lane.b32.xlu0 %v763, 64
  %v766 = vpop.permute.xlu0 %765
  %v768 = vmul.f32 %v747, %v766
  %v769 = vpack.c.bf16 %v768, %v768
  %v771 = vrot.slane %v769, 2
  %772 = vrot.lane.b32.xlu0 %v771, 32
  %v773 = vpop.permute.xlu0 %772
  %v775 = vsel %vm197, %v773, 0
  %777 = vmatpush.bf16.msra.mxu0 0
  %778 = vmatpush.bf16.msra.mxu0 0
  %779 = vmatpush.bf16.msra.mxu0 0
  %780 = vmatpush.bf16.msra.mxu0 0
  %781 = vmatpush.bf16.msra.mxu0 0
  %782 = vmatpush.bf16.msra.mxu0 0
  %783 = vmatpush.bf16.msra.mxu0 %v307
  %784 = vmatpush.bf16.msra.mxu0 %v306
  %785 = vmatmul.bf16.gmra.mxu0 %v775
  %v786 = vpop.f32.mrf.mxu0
  %v787 = vadd.f32 %v293, %v786
  %v788 = vpop.f32.mrf.mxu0
  %789 = vdwg.mxu0
  %790 = vmatpush.bf16.msra.mxu0 0
  %791 = vmatpush.bf16.msra.mxu0 0
  %792 = vmatpush.bf16.msra.mxu0 0
  %793 = vmatpush.bf16.msra.mxu0 0
  %794 = vmatpush.bf16.msra.mxu0 0
  %795 = vmatpush.bf16.msra.mxu0 0
  %796 = vmatpush.bf16.msra.mxu0 %v234
  %797 = vmatpush.bf16.msra.mxu0 %v233
  %798 = vmatmul.bf16.gmra.mxu0 %v775
  %v799 = vpop.f32.mrf.mxu0
  %v800 = vadd.f32 0.0, %v799
  %v801 = vpop.f32.mrf.mxu0
  %802 = vdwg.mxu0
  %v804 = vrot.slane %v800, 2
  %v806 = vadd.f32 %v213, %v804
  %v807 = vxor.u32 %v806, 2147483648
  %v808 = vmul.f32 %v807, 1.442695
  %v809 = vpow.pop %v808
  %v810 = vadd.f32 %v809, 1.0
  %v811 = vrcp.pop %v810
  %v812 = vmul.f32 %v810, %v811
  %v813 = vsub.f32 1.0, %v812
  %v814 = vmul.f32 %v811, %v813
  %v815 = vadd.f32 %v811, %v814
  %vm816 = vweird.f32 %v810
  %vm817 = vweird.f32 %v811
  %vm818 = vmor %vm816, %vm817
  %v819 = vsel %vm818, %v811, %v815
  %v820 = vand.u32 2147483647, %v810
  %vm821 = vcmp.eq.f32.partialorder %v820, 8.507059e+37
  %v822 = vand.u32 %v810, 2147483648
  %v823 = vor.u32 1.1754944e-38, %v822
  %v824 = vsel %vm821, %v823, %v819
  %v825 = vmul.f32 1.0, %v824
  %v826 = vtanh.pop %v806
  %v828 = vrot.slane %v762, 6
  %v830 = vmul.f32 %v825, %v828
  %832 = vrot.lane.b32.xlu0 %v826, 64
  %v833 = vpop.permute.xlu0 %832
  %v835 = vmul.f32 %v825, %v833
  %837 = vrot.lane.b32.xlu0 %v835, 32
  %v838 = vpop.permute.xlu0 %837
  %v840 = vadd.f32 %v830, %v838
  %v841 = vtanh.pop %v840
  %843 = vrot.lane.b32.xlu0 %v841, 64
  %v844 = vpop.permute.xlu0 %843
  %v846 = vmul.f32 %v825, %v844
  %v847 = vpack.c.bf16 %v846, %v846
  %v849 = vrot.slane %v847, 3
  %850 = vrot.lane.b32.xlu0 %v849, 32
  %v851 = vpop.permute.xlu0 %850
  %v853 = vsel %vm197, %v851, 0
  %855 = vmatpush.bf16.msra.mxu0 0
  %856 = vmatpush.bf16.msra.mxu0 0
  %857 = vmatpush.bf16.msra.mxu0 0
  %858 = vmatpush.bf16.msra.mxu0 0
  %859 = vmatpush.bf16.msra.mxu0 0
  %860 = vmatpush.bf16.msra.mxu0 0
  %861 = vmatpush.bf16.msra.mxu0 %v307
  %862 = vmatpush.bf16.msra.mxu0 %v306
  %863 = vmatmul.bf16.gmra.mxu0 %v853
  %v864 = vpop.f32.mrf.mxu0
  %v865 = vadd.f32 %v293, %v864
  %v866 = vpop.f32.mrf.mxu0
  %867 = vdwg.mxu0
  %869 = vrot.lane.b32.xlu0 %v401, 32
  %v870 = vpop.permute.xlu0 %869
  %873 = vrot.lane.b32.xlu0 %v479, 64
  %v874 = vpop.permute.xlu0 %873
  %877 = vrot.lane.b32.xlu0 %v557, 96
  %v878 = vpop.permute.xlu0 %877
  %881 = vrot.lane.b32.xlu0 %v709, 32
  %v882 = vpop.permute.xlu0 %881
  %885 = vrot.lane.b32.xlu0 %v787, 64
  %v886 = vpop.permute.xlu0 %885
  %889 = vrot.lane.b32.xlu0 %v865, 96
  %v890 = vpop.permute.xlu0 %889
  %v892 = vsel %vm197, %v323, %v870
  %v893 = vsel %vm85, %v892, %v874
  %vm894 = vcmask 785408
  %v895 = vsel %vm894, %v893, %v878
  %v896 = vsel %vm197, %v631, %v882
  %v897 = vsel %vm85, %v896, %v886
  %v898 = vsel %vm894, %v897, %v890
  %v901 = vrot.slane %v898, 6
  %v902 = vsel %vm109, %v895, %v901
  %904 = vst [vmem:[%s13] sm:$0xf] %v902
  %s905 = sld [smem:[#allocation2]]
  %v906 = vlaneseq
  %v907 = vshrl.u32 %v906, 7
  %v908 = vmul.u32 %v907, 96
  %v909 = vadd.s32 %v908, %v116
  %s910 = smul.u32 %s905, 16843009
  %v911 = vstv %s910
  %v912 = vadd.s32 %v909, %v911
  %v913 = vadd.s32 %v912, 1
  %v914 = vshra.s32 %v913, 16
  %v915 = vxor.u32 %v914, %v913
  %v916 = vmul.u32 %v915, 73244475
  %v917 = vshra.s32 %v916, 16
  %v918 = vxor.u32 %v917, %v916
  %v919 = vmul.u32 %v918, 73244475
  %v920 = vshra.s32 %v919, 16
  %v921 = vxor.u32 %v920, %v919
  %v922 = vand.u32 %v921, 16777215
  %v923 = vcvt.s32.f32 %v922
  %v924 = vmul.f32 %v923, 5.9604645e-08
  %vm925 = vcmask 779264
  %926 = vst.msk [vmem:[%s14] sm:$0x3] %vm925, %v924
  // Predicated region
  $region54: #{encdec_forward.1} parent=0 // pred_check
    _
  $region55: #{encdec_forward.1} parent=0 // pred_check_branch
    %928 = sbr.rel (0) target = $region57
  $region56: #{encdec_forward.1} parent=0 // pred_region
    _
  $region57: #{encdec_forward.1} parent=0 // pred_fallthru
    _
  // Predicated region
  $region58: #{encdec_forward.1} parent=0 // pred_check
    _
  $region59: #{encdec_forward.1} parent=0 // pred_check_branch
    %930 = sbr.rel (0) target = $region61
  $region60: #{encdec_forward.1} parent=0 // pred_region
    _
  $region61: #{encdec_forward.1} parent=0 // pred_fallthru
    _
  // Predicated region
  $region62: #{encdec_forward.1} parent=0 // pred_check
    _
  $region63: #{encdec_forward.1} parent=0 // pred_check_branch
    %932 = sbr.rel (0) target = $region65
  $region64: #{encdec_forward.1} parent=0 // pred_region
    _
  $region65: #{encdec_forward.1} parent=0 // pred_fallthru
    _
  // Predicated region
  $region66: #{encdec_forward.1} parent=0 // pred_check
    _
  $region67: #{encdec_forward.1} parent=0 // pred_check_branch
    %934 = sbr.rel (0) target = $region69
  $region68: #{encdec_forward.1} parent=0 // pred_region
    _
  $region69: #{encdec_forward.1} parent=0 // pred_fallthru
    _

</llo_original>
